<compile_context>
chip_gen: v6e
topology: v6e:2x2x1
jax: 0.10.0
libtpu: 0.0.40
codegen_flags: <defaults>
</compile_context>

<pallas_src>
import math
from functools import partial

import jax
import jax.numpy as jnp
from jax.experimental import pallas as pl
from jax.experimental.pallas import tpu as pltpu

_SUB = 8      # sublane quantum (second-to-last block dim)
_LANE = 128   # lane quantum   (last block dim)


def make_positional_encoding(d_model: int, max_seq_len: int = 80) -> jnp.ndarray:
    """Deterministic PE table matching the PyTorch __init__ loop exactly.

    Reproduces the module's (idiosyncratic) exponents:
      pe[pos, i]   = sin(pos / 10000 ** (2 * i       / d_model))
      pe[pos, i+1] = cos(pos / 10000 ** (2 * (i + 1) / d_model))
    for even i. Returns shape (1, max_seq_len, d_model), float32.
    """
    pos = jnp.arange(max_seq_len, dtype=jnp.float32)[:, None]          # (L, 1)
    i_even = jnp.arange(0, d_model, 2, dtype=jnp.float32)[None, :]     # (1, D/2)
    sin_part = jnp.sin(pos / jnp.power(10000.0, 2.0 * i_even / d_model))
    cos_part = jnp.cos(pos / jnp.power(10000.0, 2.0 * (i_even + 1.0) / d_model))
    pe = jnp.zeros((max_seq_len, d_model), dtype=jnp.float32)
    pe = pe.at[:, 0::2].set(sin_part)
    pe = pe.at[:, 1::2].set(cos_part)
    return pe[None]                                                    # (1, L, D)


def _round_down(a: int, q: int) -> int:
    return (a // q) * q


def _pos_enc_kernel(x_ref, pe_ref, o_ref, *, scale, col_tile, pe_is_full):
    # x_ref/o_ref: (bt, ct) slab.  pe_ref: either the current (1, ct) column
    # block, or the full (1, C) table (pe_is_full=True) sliced here.
    x = x_ref[...].astype(jnp.float32)
    if pe_is_full:
        jc = pl.program_id(0)                              # column-block index
        start = pl.multiple_of(jc * col_tile, _LANE)
        pe = pe_ref[:, pl.ds(start, col_tile)]             # (1, ct), f32
    else:
        pe = pe_ref[...]                                   # (1, ct), f32
    o_ref[...] = (x * scale + pe).astype(o_ref.dtype)      # f32 math, cast on store


def _choose_tiles(B, C, itemsize, target_tile_bytes, single_slab_bytes):
    """Pick (bt, ct).  bt is a multiple of 8 or == B; ct a multiple of 128 or == C.
    cdiv grids handle ragged trailing blocks, so no divisor search is needed."""
    total = B * C * itemsize
    if total <= single_slab_bytes:
        return B, C   # tiny input: one step; per-step overhead dominates anyway

    if C > _LANE and C * itemsize * min(B, _SUB) > target_tile_bytes:
        # Even a minimal-row, full-C slab overflows the byte target: tile columns.
        bt = B if B < _SUB else _SUB
        ct = max(_LANE, _round_down(target_tile_bytes // (bt * itemsize), _LANE))
        if ct >= C:
            ct = C
    else:
        # Full-C tiles; choose the row count to hit the byte target.
        ct = C
        bt = max(_SUB, _round_down(target_tile_bytes // max(1, C * itemsize), _SUB))
        if bt >= B:
            bt = B

    # Guarantee >= 2 grid steps so both v7x TensorCores (and their DMA engines)
    # get work.  Prefer splitting rows (keeps the lane-dense column tile intact).
    if pl.cdiv(B, bt) * pl.cdiv(C, ct) < 2:
        if B >= 2 * _SUB:
            bt = _round_down((B + 1) // 2, _SUB)
        elif C >= 2 * _LANE:
            ct = _round_down((C + 1) // 2, _LANE)
        # else: array is tiny; a single step is fine on any generation.
    return bt, ct


def positional_encoder(
    x: jnp.ndarray,
    pe: jnp.ndarray,
    d_model: int,
    *,
    target_tile_bytes: int = 4 << 20,     # ~4 MiB x tiles when tiling
    single_slab_bytes: int = 2 << 20,     # below this, one tile / one grid step
    pe_vmem_cap_bytes: int = 512 << 10,   # keep whole pe resident if <= 512 KiB
) -> jnp.ndarray:
    """x: (B, S, D); pe: (1, max_seq_len, D) float32. Returns (B, S, D) in x.dtype."""
    B, S, D = x.shape
    assert D == d_model
    scale = math.sqrt(d_model)
    dtype = x.dtype
    itemsize = jnp.dtype(dtype).itemsize

    # Lane-dense flattening: last dim C = S*D.
    C = S * D
    x2d = x.reshape(B, C)
    pe2d = pe[0, :S, :].reshape(1, C)      # keep f32: compute in f32, cast on store

    bt, ct = _choose_tiles(B, C, itemsize, target_tile_bytes, single_slab_bytes)

    # Columns on the OUTER grid axis, rows inner: a (1, ct) pe block is fetched
    # once per column block and reused across every row step.
    grid = (pl.cdiv(C, ct), pl.cdiv(B, bt))

    # pe delivery: small table + evenly tiled columns -> constant block index
    # (DMA'd into VMEM exactly once for the whole grid, sliced in-kernel).
    pe_itemsize = jnp.dtype(pe2d.dtype).itemsize
    pe_is_full = (ct < C) and (C % ct == 0) and (C * pe_itemsize <= pe_vmem_cap_bytes)
    if pe_is_full or ct == C:
        pe_spec = pl.BlockSpec((1, C), lambda jc, ib: (0, 0))
        pe_is_full = ct < C          # in-kernel slicing only needed when C is tiled
    else:
        pe_spec = pl.BlockSpec((1, ct), lambda jc, ib: (0, jc))

    kernel = partial(_pos_enc_kernel, scale=scale, col_tile=ct, pe_is_full=pe_is_full)

    out2d = pl.pallas_call(
        kernel,
        out_shape=jax.ShapeDtypeStruct((B, C), dtype),
        grid_spec=pltpu.PrefetchScalarGridSpec(
            num_scalar_prefetch=0,
            grid=grid,
            in_specs=[
                pl.BlockSpec((bt, ct), lambda jc, ib: (ib, jc)),   # x slab
                pe_spec,                                           # shared pe row
            ],
            out_specs=pl.BlockSpec((bt, ct), lambda jc, ib: (ib, jc)),
        ),
        compiler_params=pltpu.CompilerParams(
            dimension_semantics=("parallel", "parallel"),
            # ~17 MiB used with 4 MiB tiles double-buffered; 48 MiB is safe on
            # v7x (64 MiB physical) and trivially so on v5e/v6e (128 MiB).
            vmem_limit_bytes=48 << 20,
        ),
    )(x2d, pe2d)

    return out2d.reshape(B, S, D)


if __name__ == "__main__":
    d_model = 64
    max_seq_len = 80
    scale = math.sqrt(d_model)

    key = jax.random.PRNGKey(0)
    k1, k2, k3, k4 = jax.random.split(key, 4)

    pe = make_positional_encoding(d_model, max_seq_len)

    # --- test 1: demo shape, f32, single-slab fast path -----------------------
    batch, seq = 2, 8
    x = jax.random.normal(k1, (batch, seq, d_model), dtype=jnp.float32)
    out = jax.block_until_ready(positional_encoder(x, pe, d_model))
    ref = x * scale + pe[:, :seq]
    assert out.shape == (batch, seq, d_model)
    assert jnp.allclose(out, ref, atol=1e-5, rtol=1e-5)

    # --- test 2: force column tiling + resident-pe (constant map) path --------
    b2, s2 = 8, 16                       # C = 1024, ct = 128 -> grid (8, 1)
    x2 = jax.random.normal(k2, (b2, s2, d_model), dtype=jnp.float32)
    out2 = jax.block_until_ready(
        positional_encoder(x2, pe, d_model, target_tile_bytes=4096, single_slab_bytes=0)
    )
    ref2 = x2 * scale + pe[:, :s2]
    assert jnp.allclose(out2, ref2, atol=1e-5, rtol=1e-5)

    # --- test 3: ragged cdiv tiling in both rows and columns -------------------
    b3, s3 = 10, 9                       # B=10 (ragged vs bt=8), C=576 (ragged vs ct=128)
    x3 = jax.random.normal(k3, (b3, s3, d_model), dtype=jnp.float32)
    out3 = jax.block_until_ready(
        positional_encoder(x3, pe, d_model, target_tile_bytes=4096, single_slab_bytes=0)
    )
    ref3 = x3 * scale + pe[:, :s3]
    assert jnp.allclose(out3, ref3, atol=1e-5, rtol=1e-5)

    # --- test 4: >=2-grid-step guard (row split) with default tile target ------
    b4, s4 = 16, 8
    x4 = jax.random.normal(k4, (b4, s4, d_model), dtype=jnp.float32)
    out4 = jax.block_until_ready(
        positional_encoder(x4, pe, d_model, single_slab_bytes=0)
    )
    ref4 = x4 * scale + pe[:, :s4]
    assert jnp.allclose(out4, ref4, atol=1e-5, rtol=1e-5)

    # --- test 5: bf16 input (f32 math in-kernel, cast on store) ----------------
    xb = x.astype(jnp.bfloat16)
    outb = jax.block_until_ready(positional_encoder(xb, pe, d_model))
    refb = (xb.astype(jnp.float32) * scale + pe[:, :seq]).astype(jnp.bfloat16)
    assert outb.dtype == jnp.bfloat16
    assert jnp.allclose(
        outb.astype(jnp.float32), refb.astype(jnp.float32), atol=1e-2, rtol=1e-2
    )

    print("KERNEL_OK")
</pallas_src>

<mosaic_0001>
module attributes {stable_mosaic.version = 11 : i64} {
  func.func @_pos_enc_kernel(%arg0: i32, %arg1: i32, %arg2: memref<2x512xf32, #tpu.memory_space<vmem>>, %arg3: memref<1x512xf32, #tpu.memory_space<vmem>>, %arg4: memref<2x512xf32, #tpu.memory_space<vmem>>) attributes {dimension_semantics = [#tpu.dimension_semantics<parallel>, #tpu.dimension_semantics<parallel>], iteration_bounds = array<i64: 1, 1>, scalar_prefetch = 0 : i64, scratch_operands = 0 : i64, tpu.core_type = #tpu.core_type<tc>, window_params = [{transform_indices = @transform_0, window_bounds = array<i64: 2, 512>}, {pipeline_mode = #tpu.pipeline_mode<synchronous>, transform_indices = @transform_1, window_bounds = array<i64: 1, 512>}, {transform_indices = @transform_2, window_bounds = array<i64: 2, 512>}]} {
    %c0 = arith.constant 0 : index
    %c0_0 = arith.constant 0 : index
    %0 = vector.load %arg2[%c0, %c0_0] : memref<2x512xf32, #tpu.memory_space<vmem>>, vector<2x512xf32>
    %c0_1 = arith.constant 0 : index
    %c0_2 = arith.constant 0 : index
    %1 = vector.load %arg3[%c0_1, %c0_2] : memref<1x512xf32, #tpu.memory_space<vmem>>, vector<1x512xf32>
    %cst = arith.constant 8.000000e+00 : f32
    %2 = vector.broadcast %cst : f32 to vector<2x512xf32>
    %3 = arith.mulf %0, %2 : vector<2x512xf32>
    %4 = vector.broadcast %1 : vector<1x512xf32> to vector<2x512xf32>
    %5 = arith.addf %3, %4 : vector<2x512xf32>
    %c0_3 = arith.constant 0 : index
    %c0_4 = arith.constant 0 : index
    %6 = vector.load %arg4[%c0_3, %c0_4] : memref<2x512xf32, #tpu.memory_space<vmem>>, vector<2x512xf32>
    tpu.vector_store %arg4[%c0_3, %c0_4], %5 {strides = array<i32>} : memref<2x512xf32, #tpu.memory_space<vmem>>, vector<2x512xf32>,
    return
  }
  func.func @transform_0(%arg0: i32, %arg1: i32) -> (i32, i32) {
    %c0_i32 = arith.constant 0 : i32
    return %arg1, %arg0 : i32, i32
  }
  func.func @transform_1(%arg0: i32, %arg1: i32) -> (i32, i32) {
    %c0_i32 = arith.constant 0 : i32
    %c0_i32_0 = arith.constant 0 : i32
    %c0_i32_1 = arith.constant 0 : i32
    return %c0_i32, %c0_i32_0 : i32, i32
  }
  func.func @transform_2(%arg0: i32, %arg1: i32) -> (i32, i32) {
    %c0_i32 = arith.constant 0 : i32
    return %arg1, %arg0 : i32, i32
  }
}

</mosaic_0001>

<llo_original>
// kernel: tpu_custom_call.1
$region0: #{tpu_custom_call.1}
  #allocation0 [shape = 'u32[]', space=smem, size = 0x4, offset = 0x4, fixed_abs, tag = 'smem constant byte address 0x4 - core index']
  #allocation1 [shape = 'u32[144,128]{1,0:T(1,128)}', space=vmem, size = 0x12000, scoped, tag = 'internal scratch']
  %s0 = inlined_call_operand.hbm [shape: f32[2,512], index: 0, kind: input, shape index: {}]
  %s1 = inlined_call_operand.hbm [shape: f32[1,512], index: 1, kind: input, shape index: {}]
  %s2 = inlined_call_operand.hbm [shape: f32[2,512], index: 2, kind: output, shape index: {}]
  %s3 = sld [smem:[#allocation0]]
  $region26: #{tpu_custom_call.1} parent=0
    _
  %s5 = ssub.s32 1, %s3
  %s6 = scalar_select 0, %s5, %s3
  $region1: #{tpu_custom_call.1} parent=0
    #allocation2 [shape = 'u8[4096]{0}', space=vmem, size = 0x1000, scoped, tag = 'input window, operand 0, single buffered']
    #allocation3 [shape = 's32[1]{0}', space=sflag, size = 0x4, scoped, tag = 'scoped memory for tpu_custom_call.1']
    #allocation4 [shape = 's32[1]{0}', space=sflag, size = 0x4, scoped, tag = 'scoped memory for tpu_custom_call.1']
    #allocation5 [shape = 'u8[2048]{0}', space=vmem, size = 0x800, scoped, tag = 'input window, operand 1, single buffered']
    #allocation6 [shape = 's32[1]{0}', space=sflag, size = 0x4, scoped, tag = 'scoped memory for tpu_custom_call.1']
    #allocation7 [shape = 'u8[4096]{0}', space=vmem, size = 0x1000, scoped, tag = 'output window, operand 0, single buffered']
    %7 = vsyncpa [#allocation3], 0
    %8 = vsyncpa [#allocation6], 0
    %9 = vsyncpa [#allocation4], 0
    // Predicated region
    $region2: #{tpu_custom_call.1} parent=1 // pred_check
      _
    $region3: #{tpu_custom_call.1} parent=1 // pred_check_branch
      %11 = sbr.rel (0) target = $region5
    $region4: #{tpu_custom_call.1} parent=1 // pred_region
      %s13 = ssub.s32 128, 128
      %14 = vsyncadd [#allocation3], %s13
      %s16 = sshll.u32 [#allocation2], 4
      %s17 = int_to_ptr.vmem [resolvable:$true] %s16
      %19 = dma.hbm_to_vmem [thread:$0]  %s0, 128, %s17, [#allocation3]
    $region5: #{tpu_custom_call.1} parent=1 // pred_fallthru
      _
    // Predicated region
    $region6: #{tpu_custom_call.1} parent=1 // pred_check
      _
    $region7: #{tpu_custom_call.1} parent=1 // pred_check_branch
      %21 = sbr.rel (0) target = $region9
    $region8: #{tpu_custom_call.1} parent=1 // pred_region
      %s23 = ssub.s32 64, 64
      %24 = vsyncadd [#allocation6], %s23
      %s26 = sshll.u32 [#allocation5], 4
      %s27 = int_to_ptr.vmem [resolvable:$true] %s26
      %29 = dma.hbm_to_vmem [thread:$0]  %s1, 64, %s27, [#allocation6]
    $region9: #{tpu_custom_call.1} parent=1 // pred_fallthru
      _
    // Predicated region
    $region10: #{tpu_custom_call.1} parent=1 // pred_check
      _
    $region11: #{tpu_custom_call.1} parent=1 // pred_check_branch
      %31 = sbr.rel (0) target = $region13
    $region12: #{tpu_custom_call.1} parent=1 // pred_region
      %32 = dma.done [#allocation3], 128
    $region13: #{tpu_custom_call.1} parent=1 // pred_fallthru
      _
    // Predicated region
    $region14: #{tpu_custom_call.1} parent=1 // pred_check
      _
    $region15: #{tpu_custom_call.1} parent=1 // pred_check_branch
      %34 = sbr.rel (0) target = $region17
    $region16: #{tpu_custom_call.1} parent=1 // pred_region
      %35 = dma.done [#allocation6], 64
    $region17: #{tpu_custom_call.1} parent=1 // pred_fallthru
      _
    %v36 = vld [vmem:[#allocation2] sm:$0xff]
    %v37 = vld [vmem:[#allocation5] sm:$0xf]
    %v38 = vmul.f32 %v36, 8.0
    %v40 = vlaneseq
    %v41 = vshrl.u32 %v40, 7
    %v42 = vsub.s32 0, %v41
    %v43 = vrot.slane %v37, %v42
    %v44 = vlaneseq
    %v45 = vshrl.u32 %v44, 7
    %v46 = vsub.s32 1, %v45
    %v47 = vrot.slane %v37, %v46
    %v48 = vlaneseq
    %v49 = vshrl.u32 %v48, 7
    %v50 = vsub.s32 2, %v49
    %v51 = vrot.slane %v37, %v50
    %v52 = vlaneseq
    %v53 = vshrl.u32 %v52, 7
    %v54 = vsub.s32 3, %v53
    %v55 = vrot.slane %v37, %v54
    %v56 = vcombine.low %v43, %v47
    %v57 = vcombine.low %v51, %v55
    %v59 = vunpack.c.l.s4 1983009808
    %v60 = vunpack.c.0.s8 %v59
    %v61 = vlaneseq
    %v62 = vshrl.u32 %v61, 7
    %v63 = vsub.s32 %v60, %v62
    %v64 = vrot.slane %v56, %v63
    %v66 = vunpack.c.l.s4 1983009808
    %v67 = vunpack.c.0.s8 %v66
    %v68 = vlaneseq
    %v69 = vshrl.u32 %v68, 7
    %v70 = vsub.s32 %v67, %v69
    %v71 = vrot.slane %v57, %v70
    %v72 = vcombine.low %v64, %v71
    %v74 = vadd.f32 %v38, %v72
    %75 = vst [vmem:[#allocation7] sm:$0xff] %v74
    // Predicated region
    $region18: #{tpu_custom_call.1} parent=1 // pred_check
      _
    $region19: #{tpu_custom_call.1} parent=1 // pred_check_branch
      %77 = sbr.rel (0) target = $region21
    $region20: #{tpu_custom_call.1} parent=1 // pred_region
      %s79 = ssub.s32 128, 128
      %80 = vsyncadd [#allocation4], %s79
      %s82 = sshll.u32 [#allocation7], 4
      %s83 = int_to_ptr.vmem [resolvable:$true] %s82
      %85 = dma.vmem_to_hbm [thread:$0]  %s83, 128, %s2, [#allocation4]
    $region21: #{tpu_custom_call.1} parent=1 // pred_fallthru
      _
    // Predicated region
    $region22: #{tpu_custom_call.1} parent=1 // pred_check
      _
    $region23: #{tpu_custom_call.1} parent=1 // pred_check_branch
      %87 = sbr.rel (0) target = $region25
    $region24: #{tpu_custom_call.1} parent=1 // pred_region
      %88 = dma.done [#allocation4], 128
    $region25: #{tpu_custom_call.1} parent=1 // pred_fallthru
      _
    %89 = vsyncpa [#allocation3], 1
    %90 = vsyncpa [#allocation6], 1
    %91 = vsyncpa [#allocation4], 1

</llo_original>
